<compile_context>
chip_gen: v7x
topology: tpu7x:2x2x1
jax: 0.10.0
libtpu: 0.0.40
codegen_flags: <defaults>
</compile_context>

<pallas_src>
import jax
import jax.numpy as jnp
from jax.experimental import pallas as pl
from jax.experimental.pallas import tpu as pltpu

DEPTH = 4
WIDTH = 32
DD = 1          # output transform in the PyTorch module is only valid for dd == 1
TILE_N = 256    # batch points per grid step (lane-dense output row)


def resnet_kernel(x_ref, w_ref, b_ref, wout_ref, bout_ref, o_ref):
    # x_ref:    [WIDTH, TILE_N]        transposed batch tile
    # w_ref:    [DEPTH, WIDTH, WIDTH]  PyTorch nn.Linear weight layout (out, in)
    # b_ref:    [DEPTH, WIDTH, 1]
    # wout_ref: [WIDTH, 1]             (= linearOut.weight.T for dd == 1)
    # bout_ref: [1, 1]
    # o_ref:    [1, TILE_N]            lane-dense output row
    x = x_ref[...]
    xxx = x[0:1, :]                    # (1, TILE_N)  -- x[:, 0] of the original layout
    yyy = x[1:2, :]                    # (1, TILE_N)  -- x[:, 1]
    factor = xxx * (xxx - 1.0) * yyy * (yyy - 1.0)   # computed once per tile

    h = x
    for d in range(DEPTH):             # depth is static -> unrolled at trace time
        w = w_ref[d]                   # (WIDTH, WIDTH)  (out, in)
        b = b_ref[d]                   # (WIDTH, 1), broadcasts along lanes
        # transposed Linear: (h_orig @ W.T).T == W @ h_T
        h = jnp.tanh(jnp.dot(w, h, preferred_element_type=jnp.float32) + b) + h

    # linearOut(width -> 1) as a sublane reduction (avoids a width-1 MXU pass)
    out = jnp.sum(h * wout_ref[...], axis=0, keepdims=True) + bout_ref[...]  # (1, TILE_N)
    o_ref[...] = factor * out - 1.0


def resnet_forward(x, w_stack, b_stack, w_out, b_out, *, tile_n=TILE_N):
    """x: [N, WIDTH] float32; weights in PyTorch layouts (see kernel docstring)."""
    n = x.shape[0]
    n_pad = ((n + tile_n - 1) // tile_n) * tile_n
    x_t = x.T                                        # (WIDTH, N): batch on lanes
    if n_pad != n:
        x_t = jnp.pad(x_t, ((0, 0), (0, n_pad - n)))

    out_row = pl.pallas_call(
        resnet_kernel,
        out_shape=jax.ShapeDtypeStruct((1, n_pad), jnp.float32),
        grid=(n_pad // tile_n,),
        in_specs=[
            pl.BlockSpec((WIDTH, tile_n), lambda i: (0, i)),          # x tile per step
            pl.BlockSpec((DEPTH, WIDTH, WIDTH), lambda i: (0, 0, 0)), # weights: resident
            pl.BlockSpec((DEPTH, WIDTH, 1), lambda i: (0, 0, 0)),
            pl.BlockSpec((WIDTH, DD), lambda i: (0, 0)),
            pl.BlockSpec((1, DD), lambda i: (0, 0)),
        ],
        out_specs=pl.BlockSpec((1, tile_n), lambda i: (0, i)),
        compiler_params=pltpu.CompilerParams(
            dimension_semantics=("parallel",),       # shard batch grid across TCs (v7x)
        ),
    )(x_t, w_stack, b_stack, w_out, b_out)

    return out_row[0, :n].reshape(n, DD)


def resnet_reference(x, w_stack, b_stack, w_out, b_out):
    """Pure-JAX emulation of the PyTorch forward (weights in PyTorch layout)."""
    xxx = x[:, 0:1]
    yyy = x[:, 1:2]
    h = x
    for d in range(DEPTH):
        h = jnp.tanh(h @ w_stack[d].T + b_stack[d][:, 0]) + h
    out = h @ w_out + b_out[0]                       # (N, 1)
    return xxx * (xxx - 1.0) * out * yyy * (yyy - 1.0) - 1.0


if __name__ == "__main__":
    key = jax.random.PRNGKey(0)
    k_x, k_w, k_b, k_wo, k_bo = jax.random.split(key, 5)

    N = 1024  # PINN-style collocation batch; amortizes launch/step overhead
    x = jax.random.uniform(k_x, (N, WIDTH), dtype=jnp.float32)
    # nn.Linear(width, width) weights are (out, in); biases stored as columns.
    w_stack = 0.1 * jax.random.normal(k_w, (DEPTH, WIDTH, WIDTH), dtype=jnp.float32)
    b_stack = 0.1 * jax.random.normal(k_b, (DEPTH, WIDTH, 1), dtype=jnp.float32)
    w_out = 0.1 * jax.random.normal(k_wo, (WIDTH, DD), dtype=jnp.float32)
    b_out = 0.1 * jax.random.normal(k_bo, (1, DD), dtype=jnp.float32)

    out = resnet_forward(x, w_stack, b_stack, w_out, b_out)
    out = jax.block_until_ready(out)

    ref = resnet_reference(x, w_stack, b_stack, w_out, b_out)
    assert out.shape == (N, DD)
    assert jnp.allclose(out, ref, atol=1e-5, rtol=1e-5), "mismatch vs JAX reference"

    print("KERNEL_OK")
</pallas_src>

<mosaic_0001>
module attributes {stable_mosaic.version = 11 : i64} {
  func.func @resnet_kernel(%arg0: i32, %arg1: memref<32x256xf32, #tpu.memory_space<vmem>>, %arg2: memref<4x32x32xf32, #tpu.memory_space<vmem>>, %arg3: memref<4x32x1xf32, #tpu.memory_space<vmem>>, %arg4: memref<32x1xf32, #tpu.memory_space<vmem>>, %arg5: memref<1x1xf32, #tpu.memory_space<vmem>>, %arg6: memref<1x256xf32, #tpu.memory_space<vmem>>) attributes {dimension_semantics = [#tpu.dimension_semantics<parallel>], iteration_bounds = array<i64: 4>, scalar_prefetch = 0 : i64, scratch_operands = 0 : i64, tpu.core_type = #tpu.core_type<tc>, window_params = [{transform_indices = @transform_0, window_bounds = array<i64: 32, 256>}, {pipeline_mode = #tpu.pipeline_mode<synchronous>, transform_indices = @transform_1, window_bounds = array<i64: 4, 32, 32>}, {pipeline_mode = #tpu.pipeline_mode<synchronous>, transform_indices = @transform_2, window_bounds = array<i64: 4, 32, 1>}, {pipeline_mode = #tpu.pipeline_mode<synchronous>, transform_indices = @transform_3, window_bounds = array<i64: 32, 1>}, {pipeline_mode = #tpu.pipeline_mode<synchronous>, transform_indices = @transform_4, window_bounds = array<i64: 1, 1>}, {transform_indices = @transform_5, window_bounds = array<i64: 1, 256>}]} {
    %c0 = arith.constant 0 : index
    %c0_0 = arith.constant 0 : index
    %0 = vector.load %arg1[%c0, %c0_0] : memref<32x256xf32, #tpu.memory_space<vmem>>, vector<32x256xf32>
    %1 = vector.extract_strided_slice %0 {offsets = [0, 0], sizes = [1, 256], strides = [1, 1]} : vector<32x256xf32> to vector<1x256xf32>
    %2 = vector.extract_strided_slice %0 {offsets = [1, 0], sizes = [1, 256], strides = [1, 1]} : vector<32x256xf32> to vector<1x256xf32>
    %cst = arith.constant 1.000000e+00 : f32
    %3 = vector.broadcast %cst : f32 to vector<1x256xf32>
    %4 = arith.subf %1, %3 : vector<1x256xf32>
    %5 = arith.mulf %1, %4 : vector<1x256xf32>
    %6 = arith.mulf %5, %2 : vector<1x256xf32>
    %cst_1 = arith.constant 1.000000e+00 : f32
    %7 = vector.broadcast %cst_1 : f32 to vector<1x256xf32>
    %8 = arith.subf %2, %7 : vector<1x256xf32>
    %9 = arith.mulf %6, %8 : vector<1x256xf32>
    %c0_2 = arith.constant 0 : index
    %c0_3 = arith.constant 0 : index
    %c0_4 = arith.constant 0 : index
    %10 = vector.load %arg2[%c0_2, %c0_3, %c0_4] : memref<4x32x32xf32, #tpu.memory_space<vmem>>, vector<1x32x32xf32>
    %11 = vector.shape_cast %10 : vector<1x32x32xf32> to vector<32x32xf32>
    %c0_5 = arith.constant 0 : index
    %c0_6 = arith.constant 0 : index
    %c0_7 = arith.constant 0 : index
    %12 = vector.load %arg3[%c0_5, %c0_6, %c0_7] : memref<4x32x1xf32, #tpu.memory_space<vmem>>, vector<1x32x1xf32>
    %13 = vector.shape_cast %12 : vector<1x32x1xf32> to vector<32x1xf32>
    %cst_8 = arith.constant dense<0.000000e+00> : vector<32x256xf32>
    %14 = tpu.matmul %11, %0, %cst_8 {dimension_numbers = #tpu.dot_dimension_numbers<[1], [0], [0], [1], [0, 0, 1, 1], [], []>} : vector<32x32xf32>, vector<32x256xf32>, vector<32x256xf32> -> vector<32x256xf32>
    %15 = vector.broadcast %13 : vector<32x1xf32> to vector<32x256xf32>
    %16 = arith.addf %14, %15 : vector<32x256xf32>
    %17 = math.tanh %16 : vector<32x256xf32>
    %18 = arith.addf %17, %0 : vector<32x256xf32>
    %c1 = arith.constant 1 : index
    %c0_9 = arith.constant 0 : index
    %c0_10 = arith.constant 0 : index
    %19 = vector.load %arg2[%c1, %c0_9, %c0_10] : memref<4x32x32xf32, #tpu.memory_space<vmem>>, vector<1x32x32xf32>
    %20 = vector.shape_cast %19 : vector<1x32x32xf32> to vector<32x32xf32>
    %c1_11 = arith.constant 1 : index
    %c0_12 = arith.constant 0 : index
    %c0_13 = arith.constant 0 : index
    %21 = vector.load %arg3[%c1_11, %c0_12, %c0_13] : memref<4x32x1xf32, #tpu.memory_space<vmem>>, vector<1x32x1xf32>
    %22 = vector.shape_cast %21 : vector<1x32x1xf32> to vector<32x1xf32>
    %cst_14 = arith.constant dense<0.000000e+00> : vector<32x256xf32>
    %23 = tpu.matmul %20, %18, %cst_14 {dimension_numbers = #tpu.dot_dimension_numbers<[1], [0], [0], [1], [0, 0, 1, 1], [], []>} : vector<32x32xf32>, vector<32x256xf32>, vector<32x256xf32> -> vector<32x256xf32>
    %24 = vector.broadcast %22 : vector<32x1xf32> to vector<32x256xf32>
    %25 = arith.addf %23, %24 : vector<32x256xf32>
    %26 = math.tanh %25 : vector<32x256xf32>
    %27 = arith.addf %26, %18 : vector<32x256xf32>
    %c2 = arith.constant 2 : index
    %c0_15 = arith.constant 0 : index
    %c0_16 = arith.constant 0 : index
    %28 = vector.load %arg2[%c2, %c0_15, %c0_16] : memref<4x32x32xf32, #tpu.memory_space<vmem>>, vector<1x32x32xf32>
    %29 = vector.shape_cast %28 : vector<1x32x32xf32> to vector<32x32xf32>
    %c2_17 = arith.constant 2 : index
    %c0_18 = arith.constant 0 : index
    %c0_19 = arith.constant 0 : index
    %30 = vector.load %arg3[%c2_17, %c0_18, %c0_19] : memref<4x32x1xf32, #tpu.memory_space<vmem>>, vector<1x32x1xf32>
    %31 = vector.shape_cast %30 : vector<1x32x1xf32> to vector<32x1xf32>
    %cst_20 = arith.constant dense<0.000000e+00> : vector<32x256xf32>
    %32 = tpu.matmul %29, %27, %cst_20 {dimension_numbers = #tpu.dot_dimension_numbers<[1], [0], [0], [1], [0, 0, 1, 1], [], []>} : vector<32x32xf32>, vector<32x256xf32>, vector<32x256xf32> -> vector<32x256xf32>
    %33 = vector.broadcast %31 : vector<32x1xf32> to vector<32x256xf32>
    %34 = arith.addf %32, %33 : vector<32x256xf32>
    %35 = math.tanh %34 : vector<32x256xf32>
    %36 = arith.addf %35, %27 : vector<32x256xf32>
    %c3 = arith.constant 3 : index
    %c0_21 = arith.constant 0 : index
    %c0_22 = arith.constant 0 : index
    %37 = vector.load %arg2[%c3, %c0_21, %c0_22] : memref<4x32x32xf32, #tpu.memory_space<vmem>>, vector<1x32x32xf32>
    %38 = vector.shape_cast %37 : vector<1x32x32xf32> to vector<32x32xf32>
    %c3_23 = arith.constant 3 : index
    %c0_24 = arith.constant 0 : index
    %c0_25 = arith.constant 0 : index
    %39 = vector.load %arg3[%c3_23, %c0_24, %c0_25] : memref<4x32x1xf32, #tpu.memory_space<vmem>>, vector<1x32x1xf32>
    %40 = vector.shape_cast %39 : vector<1x32x1xf32> to vector<32x1xf32>
    %cst_26 = arith.constant dense<0.000000e+00> : vector<32x256xf32>
    %41 = tpu.matmul %38, %36, %cst_26 {dimension_numbers = #tpu.dot_dimension_numbers<[1], [0], [0], [1], [0, 0, 1, 1], [], []>} : vector<32x32xf32>, vector<32x256xf32>, vector<32x256xf32> -> vector<32x256xf32>
    %42 = vector.broadcast %40 : vector<32x1xf32> to vector<32x256xf32>
    %43 = arith.addf %41, %42 : vector<32x256xf32>
    %44 = math.tanh %43 : vector<32x256xf32>
    %45 = arith.addf %44, %36 : vector<32x256xf32>
    %c0_27 = arith.constant 0 : index
    %c0_28 = arith.constant 0 : index
    %46 = vector.load %arg4[%c0_27, %c0_28] : memref<32x1xf32, #tpu.memory_space<vmem>>, vector<32x1xf32>
    %47 = vector.broadcast %46 : vector<32x1xf32> to vector<32x256xf32>
    %48 = arith.mulf %45, %47 : vector<32x256xf32>
    %cst_29 = arith.constant dense<0.000000e+00> : vector<256xf32>
    %49 = vector.multi_reduction <add>, %48, %cst_29 [0] : vector<32x256xf32> to vector<256xf32>
    %50 = vector.shape_cast %49 : vector<256xf32> to vector<1x256xf32>
    %c0_30 = arith.constant 0 : index
    %c0_31 = arith.constant 0 : index
    %51 = vector.load %arg5[%c0_30, %c0_31] : memref<1x1xf32, #tpu.memory_space<vmem>>, vector<1x1xf32>
    %52 = vector.broadcast %51 : vector<1x1xf32> to vector<1x256xf32>
    %53 = arith.addf %50, %52 : vector<1x256xf32>
    %54 = arith.mulf %9, %53 : vector<1x256xf32>
    %cst_32 = arith.constant 1.000000e+00 : f32
    %55 = vector.broadcast %cst_32 : f32 to vector<1x256xf32>
    %56 = arith.subf %54, %55 : vector<1x256xf32>
    %c0_33 = arith.constant 0 : index
    %c0_34 = arith.constant 0 : index
    %57 = vector.load %arg6[%c0_33, %c0_34] : memref<1x256xf32, #tpu.memory_space<vmem>>, vector<1x256xf32>
    tpu.vector_store %arg6[%c0_33, %c0_34], %56 {strides = array<i32>} : memref<1x256xf32, #tpu.memory_space<vmem>>, vector<1x256xf32>,
    return
  }
  func.func @transform_0(%arg0: i32) -> (i32, i32) {
    %c0_i32 = arith.constant 0 : i32
    %c0_i32_0 = arith.constant 0 : i32
    return %c0_i32, %arg0 : i32, i32
  }
  func.func @transform_1(%arg0: i32) -> (i32, i32, i32) {
    %c0_i32 = arith.constant 0 : i32
    %c0_i32_0 = arith.constant 0 : i32
    %c0_i32_1 = arith.constant 0 : i32
    %c0_i32_2 = arith.constant 0 : i32
    return %c0_i32, %c0_i32_0, %c0_i32_1 : i32, i32, i32
  }
  func.func @transform_2(%arg0: i32) -> (i32, i32, i32) {
    %c0_i32 = arith.constant 0 : i32
    %c0_i32_0 = arith.constant 0 : i32
    %c0_i32_1 = arith.constant 0 : i32
    %c0_i32_2 = arith.constant 0 : i32
    return %c0_i32, %c0_i32_0, %c0_i32_1 : i32, i32, i32
  }
  func.func @transform_3(%arg0: i32) -> (i32, i32) {
    %c0_i32 = arith.constant 0 : i32
    %c0_i32_0 = arith.constant 0 : i32
    %c0_i32_1 = arith.constant 0 : i32
    return %c0_i32, %c0_i32_0 : i32, i32
  }
  func.func @transform_4(%arg0: i32) -> (i32, i32) {
    %c0_i32 = arith.constant 0 : i32
    %c0_i32_0 = arith.constant 0 : i32
    %c0_i32_1 = arith.constant 0 : i32
    return %c0_i32, %c0_i32_0 : i32, i32
  }
  func.func @transform_5(%arg0: i32) -> (i32, i32) {
    %c0_i32 = arith.constant 0 : i32
    %c0_i32_0 = arith.constant 0 : i32
    return %c0_i32, %arg0 : i32, i32
  }
}

</mosaic_0001>

<llo_original>
// kernel: tpu_custom_call.1
$region0: #{tpu_custom_call.1}
  #allocation0 [shape = 'u32[]', space=smem, size = 0x4, offset = 0x4, fixed_abs, tag = 'smem constant byte address 0x4 - core index']
  #allocation1 [shape = 'u32[144,128]{1,0:T(1,128)}', space=vmem, size = 0x12000, scoped, tag = 'internal scratch']
  #allocation2 [shape = 'f32[1,1]{1,0:T(1,128)S(1)}', space=vmem, size = 0x200, scoped, tag = 'scoped memory for tpu_custom_call.1']
  %s0 = inlined_call_operand.hbm [shape: f32[32,1024], index: 0, kind: input, shape index: {}]
  %s1 = inlined_call_operand.vmem [shape: f32[4,32,32], index: 1, kind: input, shape index: {}]
  %s2 = inlined_call_operand.vmem [shape: f32[4,32,1], index: 2, kind: input, shape index: {}]
  %s3 = inlined_call_operand.vmem [shape: f32[32,1], index: 3, kind: input, shape index: {}]
  %s4 = inlined_call_operand.<no memory space> [shape: f32[1,1], index: 4, kind: input, shape index: {}]
  %s5 = inlined_call_operand.hbm [shape: f32[1,1024], index: 5, kind: output, shape index: {}]
  %s6 = sld [smem:[#allocation0]]
  $region57: #{tpu_custom_call.1} parent=0
    _
  %s8 = ssub.s32 1, %s6
  %s9 = scalar_select 0, %s8, %s6
  %v10 = vstv %s4
  %11 = vst [vmem:[#allocation2] sm:$0x1] %v10
  $region1: #{tpu_custom_call.1} parent=0
    #allocation3 [shape = 'u8[65536]{0}', space=vmem, size = 0x10000, scoped, tag = 'input window, operand 0']
    #allocation4 [shape = 's32[2]{0}', space=sflag, size = 0x8, scoped, tag = 'scoped memory for tpu_custom_call.1']
    #allocation5 [shape = 's32[2]{0}', space=sflag, size = 0x8, scoped, tag = 'scoped memory for tpu_custom_call.1']
    #allocation6 [shape = 'u8[2048]{0}', space=vmem, size = 0x800, scoped, tag = 'output window, operand 0']
    %12 = vsyncpa [#allocation4], 0
    %s13 = scalar_lea.sflag [#allocation4], 1
    %14 = vsyncpa %s13, 0
    %15 = vsyncpa [#allocation5], 0
    %s16 = scalar_lea.sflag [#allocation5], 1
    %17 = vsyncpa %s16, 0
    loop: start=0, step=1, limit=6
    $region2: #{tpu_custom_call.1} parent=1 // loop_pre_header
      _
    $region3: #{tpu_custom_call.1} parent=1 // loop_header
      %s19 = sphi 0, %s23
      %p20 = scmp.ge.s32.totalorder %s19, 6
      %s29 = sphi 0, %s31
      %s32 = sphi 0, %s29
      %s33 = sphi 0, %s32
      %s49 = sphi 0, %s33
      %s53 = sphi 0, %s53
      %s55 = sphi 0, %s53
      %s56 = sphi 0, %s55
      %s70 = sphi 0, %s56
      %s74 = sphi 0, %s74
      %s76 = sphi 0, %s74
      %s77 = sphi 0, %s76
      %s91 = sphi 0, %s77
      %s95 = sphi 0, %s95
      %s97 = sphi 0, %s95
      %s98 = sphi 0, %s97
      %s112 = sphi 0, %s98
      %s116 = sphi 0, %s116
      %s118 = sphi 0, %s116
      %s119 = sphi 0, %s118
      %s133 = sphi 0, %s119
      %s139 = sphi 0, %s141
      %s142 = sphi 0, %s139
      %s143 = sphi 0, %s142
      %s159 = sphi 0, %s143
    $region4: #{tpu_custom_call.1} parent=1 // loop_header_branch
      %22 = sbr.rel (%p20) target = $region8
    $region5: #{tpu_custom_call.1} parent=1 // loop_body
      %s24 = ssub.s32 %s19, 1
      %s25 = ssub.s32 %s19, 2
      %s26 = sadd.s32 %s19, 1
      %s27 = ssub.s32 %s19, %s26
      %p28 = scmp.eq.s32.totalorder %s27, 0
      %s30 = sadd.s32 %s29, 1
      %s31 = scalar_select %p28, %s29, %s30
      %p34 = pneg %p28
      %p35 = scmp.eq.s32.totalorder %s19, 3
      %p36 = por %p34, %p35
      %p37 = scmp.ne.s32.totalorder %s29, %s32
      %p38 = scmp.eq.s32.totalorder %s19, 0
      %p39 = por %p37, %p38
      %p40 = scmp.ne.s32.totalorder %s29, %s32
      %p41 = scmp.eq.s32.totalorder %s24, 3
      %p42 = por %p40, %p41
      %p43 = scmp.ne.s32.totalorder %s32, %s33
      %p44 = scmp.eq.s32.totalorder %s24, 0
      %p45 = por %p43, %p44
      %p46 = scmp.ne.s32.totalorder %s32, %s33
      %p47 = scmp.eq.s32.totalorder %s25, 3
      %p48 = por %p46, %p47
      %p50 = scmp.ne.s32.totalorder %s33, %s49
      %p51 = scmp.eq.s32.totalorder %s25, 0
      %p52 = por %p50, %p51
      %s54 = sadd.s32 %s53, 1
      %p57 = scmp.eq.s32.totalorder %s19, 3
      %p58 = scmp.ne.s32.totalorder %s53, %s55
      %p59 = scmp.eq.s32.totalorder %s19, 0
      %p60 = por %p58, %p59
      %p61 = scmp.ne.s32.totalorder %s53, %s55
      %p62 = scmp.eq.s32.totalorder %s24, 3
      %p63 = por %p61, %p62
      %p64 = scmp.ne.s32.totalorder %s55, %s56
      %p65 = scmp.eq.s32.totalorder %s24, 0
      %p66 = por %p64, %p65
      %p67 = scmp.ne.s32.totalorder %s55, %s56
      %p68 = scmp.eq.s32.totalorder %s25, 3
      %p69 = por %p67, %p68
      %p71 = scmp.ne.s32.totalorder %s56, %s70
      %p72 = scmp.eq.s32.totalorder %s25, 0
      %p73 = por %p71, %p72
      %s75 = sadd.s32 %s74, 1
      %p78 = scmp.eq.s32.totalorder %s19, 3
      %p79 = scmp.ne.s32.totalorder %s74, %s76
      %p80 = scmp.eq.s32.totalorder %s19, 0
      %p81 = por %p79, %p80
      %p82 = scmp.ne.s32.totalorder %s74, %s76
      %p83 = scmp.eq.s32.totalorder %s24, 3
      %p84 = por %p82, %p83
      %p85 = scmp.ne.s32.totalorder %s76, %s77
      %p86 = scmp.eq.s32.totalorder %s24, 0
      %p87 = por %p85, %p86
      %p88 = scmp.ne.s32.totalorder %s76, %s77
      %p89 = scmp.eq.s32.totalorder %s25, 3
      %p90 = por %p88, %p89
      %p92 = scmp.ne.s32.totalorder %s77, %s91
      %p93 = scmp.eq.s32.totalorder %s25, 0
      %p94 = por %p92, %p93
      %s96 = sadd.s32 %s95, 1
      %p99 = scmp.eq.s32.totalorder %s19, 3
      %p100 = scmp.ne.s32.totalorder %s95, %s97
      %p101 = scmp.eq.s32.totalorder %s19, 0
      %p102 = por %p100, %p101
      %p103 = scmp.ne.s32.totalorder %s95, %s97
      %p104 = scmp.eq.s32.totalorder %s24, 3
      %p105 = por %p103, %p104
      %p106 = scmp.ne.s32.totalorder %s97, %s98
      %p107 = scmp.eq.s32.totalorder %s24, 0
      %p108 = por %p106, %p107
      %p109 = scmp.ne.s32.totalorder %s97, %s98
      %p110 = scmp.eq.s32.totalorder %s25, 3
      %p111 = por %p109, %p110
      %p113 = scmp.ne.s32.totalorder %s98, %s112
      %p114 = scmp.eq.s32.totalorder %s25, 0
      %p115 = por %p113, %p114
      %s117 = sadd.s32 %s116, 1
      %p120 = scmp.eq.s32.totalorder %s19, 3
      %p121 = scmp.ne.s32.totalorder %s116, %s118
      %p122 = scmp.eq.s32.totalorder %s19, 0
      %p123 = por %p121, %p122
      %p124 = scmp.ne.s32.totalorder %s116, %s118
      %p125 = scmp.eq.s32.totalorder %s24, 3
      %p126 = por %p124, %p125
      %p127 = scmp.ne.s32.totalorder %s118, %s119
      %p128 = scmp.eq.s32.totalorder %s24, 0
      %p129 = por %p127, %p128
      %p130 = scmp.ne.s32.totalorder %s118, %s119
      %p131 = scmp.eq.s32.totalorder %s25, 3
      %p132 = por %p130, %p131
      %p134 = scmp.ne.s32.totalorder %s119, %s133
      %p135 = scmp.eq.s32.totalorder %s25, 0
      %p136 = por %p134, %p135
      %s137 = ssub.s32 %s19, %s26
      %p138 = scmp.eq.s32.totalorder %s137, 0
      %s140 = sadd.s32 %s139, 1
      %s141 = scalar_select %p138, %s139, %s140
      %p144 = pneg %p138
      %p145 = scmp.eq.s32.totalorder %s19, 3
      %p146 = por %p144, %p145
      %p147 = scmp.ne.s32.totalorder %s139, %s142
      %p148 = scmp.eq.s32.totalorder %s19, 0
      %p149 = por %p147, %p148
      %p150 = scmp.ne.s32.totalorder %s139, %s142
      %p151 = scmp.eq.s32.totalorder %s24, 3
      %p152 = por %p150, %p151
      %p153 = scmp.ne.s32.totalorder %s142, %s143
      %p154 = scmp.eq.s32.totalorder %s24, 0
      %p155 = por %p153, %p154
      %p156 = scmp.ne.s32.totalorder %s142, %s143
      %p157 = scmp.eq.s32.totalorder %s25, 3
      %p158 = por %p156, %p157
      %p160 = scmp.ne.s32.totalorder %s143, %s159
      %p161 = scmp.eq.s32.totalorder %s25, 0
      %p162 = por %p160, %p161
      %p163 = scmp.le.s32.totalorder 1, %s19
      %p164 = scmp.lt.s32.totalorder %s19, 5
      %p165 = pnand %p163, %p164
      %p166 = pneg %p165
      // Predicated region
      $region9: #{tpu_custom_call.1} parent=5 // pred_check
        _
      $region10: #{tpu_custom_call.1} parent=5 // pred_check_branch
        %168 = sbr.rel (%p165) target = $region12
      $region11: #{tpu_custom_call.1} parent=5 // pred_region
        %s169 = ssub.s32 %s19, 1
        // Predicated region
        $region13: #{tpu_custom_call.1} parent=11 // pred_check
          %p170 = pneg %p66
        $region14: #{tpu_custom_call.1} parent=11 // pred_check_branch
          %172 = sbr.rel (%p170) target = $region16
        $region15: #{tpu_custom_call.1} parent=11 // pred_region
          _
        $region16: #{tpu_custom_call.1} parent=11 // pred_fallthru
          _
        // Predicated region
        $region17: #{tpu_custom_call.1} parent=11 // pred_check
          %p173 = pneg %p87
        $region18: #{tpu_custom_call.1} parent=11 // pred_check_branch
          %175 = sbr.rel (%p173) target = $region20
        $region19: #{tpu_custom_call.1} parent=11 // pred_region
          _
        $region20: #{tpu_custom_call.1} parent=11 // pred_fallthru
          _
        // Predicated region
        $region21: #{tpu_custom_call.1} parent=11 // pred_check
          %p176 = pneg %p108
        $region22: #{tpu_custom_call.1} parent=11 // pred_check_branch
          %178 = sbr.rel (%p176) target = $region24
        $region23: #{tpu_custom_call.1} parent=11 // pred_region
          _
        $region24: #{tpu_custom_call.1} parent=11 // pred_fallthru
          _
        // Predicated region
        $region25: #{tpu_custom_call.1} parent=11 // pred_check
          %p179 = pneg %p129
        $region26: #{tpu_custom_call.1} parent=11 // pred_check_branch
          %181 = sbr.rel (%p179) target = $region28
        $region27: #{tpu_custom_call.1} parent=11 // pred_region
          _
        $region28: #{tpu_custom_call.1} parent=11 // pred_fallthru
          _
      $region12: #{tpu_custom_call.1} parent=5 // pred_fallthru
        _
      %p182 = scmp.lt.s32.totalorder %s19, 4
      // Predicated region
      $region29: #{tpu_custom_call.1} parent=5 // pred_check
        %p183 = pneg %p182
      $region30: #{tpu_custom_call.1} parent=5 // pred_check_branch
        %185 = sbr.rel (%p183) target = $region32
      $region31: #{tpu_custom_call.1} parent=5 // pred_region
        // Predicated region
        $region33: #{tpu_custom_call.1} parent=31 // pred_check
          %p186 = pneg %p39
        $region34: #{tpu_custom_call.1} parent=31 // pred_check_branch
          %188 = sbr.rel (%p186) target = $region36
        $region35: #{tpu_custom_call.1} parent=31 // pred_region
          %s189 = sand.u32 %s29, 1
          %s190 = scalar_lea.sflag [#allocation4], %s189
          %s191 = sand.u32 %s29, 1
          %s192 = smul.addr %s191, 64
          %s193 = scalar_lea.vmem [#allocation3], %s192
          %s194 = smul.u32 2, %s19
          %s196 = ssub.s32 1024, 1024
          %197 = vsyncadd %s190, %s196
          %s198 = smul.addr %s194, 128
          %s199 = scalar_lea.hbm %s0, %s198
          %s200 = sshll.u32 %s193, 4
          %s201 = int_to_ptr.vmem [resolvable:$true] %s200
          %206 = dma.hbm_to_vmem [thread:$0]  %s199, 1024, %s201, %s190, 1024, 256, 16
        $region36: #{tpu_custom_call.1} parent=31 // pred_fallthru
          _
      $region32: #{tpu_custom_call.1} parent=5 // pred_fallthru
        _
      %p207 = scmp.le.s32.totalorder 1, %s19
      %p208 = scmp.lt.s32.totalorder %s19, 5
      %p209 = pnand %p207, %p208
      %p210 = pneg %p209
      // Predicated region
      $region37: #{tpu_custom_call.1} parent=5 // pred_check
        _
      $region38: #{tpu_custom_call.1} parent=5 // pred_check_branch
        %212 = sbr.rel (%p209) target = $region40
      $region39: #{tpu_custom_call.1} parent=5 // pred_region
        %s213 = ssub.s32 %s19, 1
        %s214 = sand.u32 %s32, 1
        %s215 = scalar_lea.sflag [#allocation4], %s214
        %s216 = sand.u32 %s32, 1
        %s217 = smul.addr %s216, 64
        %s218 = scalar_lea.vmem [#allocation3], %s217
        // Predicated region
        $region41: #{tpu_custom_call.1} parent=39 // pred_check
          %p219 = pneg %p45
        $region42: #{tpu_custom_call.1} parent=39 // pred_check_branch
          %221 = sbr.rel (%p219) target = $region44
        $region43: #{tpu_custom_call.1} parent=39 // pred_region
          %222 = dma.done %s215, 1024
        $region44: #{tpu_custom_call.1} parent=39 // pred_fallthru
          _
        %s223 = sand.u32 %s32, 1
        %s224 = scalar_lea.sflag [#allocation4], %s223
        %s225 = sand.u32 %s32, 1
        %s226 = smul.addr %s225, 64
        %s227 = scalar_lea.vmem [#allocation3], %s226
        %p228 = pneg %p45
        %p229 = pneg %p42
        %p230 = pneg %p66
        %p231 = pneg %p63
        %p232 = pneg %p87
        %p233 = pneg %p84
        %p234 = pneg %p108
        %p235 = pneg %p105
        %p236 = pneg %p129
        %p237 = pneg %p126
        %p238 = pneg %p155
        %p239 = pneg %p152
        %s240 = sand.u32 %s142, 1
        %s241 = scalar_lea.sflag [#allocation5], %s240
        %s242 = sand.u32 %s142, 1
        %s243 = smul.addr %s242, 2
        %s244 = scalar_lea.vmem [#allocation6], %s243
        %s245 = smul.u32 2, %s24
        %s246 = smul.u32 2, %s24
        %v247 = vld [vmem:[%s218] sm:$0xff]
        %v248 = vld [vmem:[%s218 + $0x8] sm:$0xff]
        %v249 = vld [vmem:[%s218 + $0x10] sm:$0xff]
        %v250 = vld [vmem:[%s218 + $0x18] sm:$0xff]
        %v251 = vld [vmem:[%s218 + $0x20] sm:$0xff]
        %v252 = vld [vmem:[%s218 + $0x28] sm:$0xff]
        %v253 = vld [vmem:[%s218 + $0x30] sm:$0xff]
        %v254 = vld [vmem:[%s218 + $0x38] sm:$0xff]
        %v255 = vsub.f32 %v247, 1.0
        %v256 = vsub.f32 %v248, 1.0
        %v257 = vmul.f32 %v247, %v255
        %v258 = vmul.f32 %v248, %v256
        %v261 = vrot.slane %v247, 1
        %v262 = vrot.slane %v248, 1
        %v265 = vmul.f32 %v257, %v261
        %v266 = vmul.f32 %v258, %v262
        %v269 = vrot.slane %v255, 1
        %v270 = vrot.slane %v256, 1
        %v273 = vmul.f32 %v265, %v269
        %v274 = vmul.f32 %v266, %v270
        %v275 = vld [vmem:[%s1] sm:$0xff]
        %v276 = vld [vmem:[%s1 + $0x8] sm:$0xff]
        %v277 = vld [vmem:[%s1 + $0x10] sm:$0xff]
        %v278 = vld [vmem:[%s1 + $0x18] sm:$0xff]
        %v279 = vld [vmem:[%s2] sm:$0xff]
        %v280 = vld [vmem:[%s2 + $0x8] sm:$0xff]
        %v281 = vld [vmem:[%s2 + $0x10] sm:$0xff]
        %v282 = vld [vmem:[%s2 + $0x18] sm:$0xff]
        %284 = vset.pattern.permute.xlu0 0
        %285 = vperm.xlu0 %284, %v279
        %v286 = vpop.permute.xlu0 %285
        %289 = vset.pattern.permute.xlu0 0
        %290 = vperm.xlu0 %289, %v280
        %v291 = vpop.permute.xlu0 %290
        %294 = vset.pattern.permute.xlu0 0
        %295 = vperm.xlu0 %294, %v281
        %v296 = vpop.permute.xlu0 %295
        %299 = vset.pattern.permute.xlu0 0
        %300 = vperm.xlu0 %299, %v282
        %v301 = vpop.permute.xlu0 %300
        %vm303 = vcmask 261120
        %v305 = vsel %vm303, %v275, 0
        %v308 = vsel %vm303, %v276, 0
        %v311 = vsel %vm303, %v277, 0
        %v314 = vsel %vm303, %v278, 0
        %316 = vmatprep.subr.mxu0 %v248
        %317 = vmatpush1.msra.mxu0 %v247
        %318 = vmatprep.subr.mxu0 %v250
        %319 = vmatpush1.msra.mxu0 %v249
        %320 = vmatprep.subr.mxu0 %v252
        %321 = vmatpush1.msra.mxu0 %v251
        %322 = vmatprep.subr.mxu0 %v254
        %323 = vmatpush1.msra.mxu0 %v253
        %324 = vmatprep.subr.mxu0 0.0
        %325 = vmatpush1.msra.mxu0 0.0
        %326 = vmatprep.subr.mxu0 0.0
        %327 = vmatpush1.msra.mxu0 0.0
        %328 = vmatprep.subr.mxu0 0.0
        %329 = vmatpush1.msra.mxu0 0.0
        %330 = vmatprep.subr.mxu0 0.0
        %331 = vmatpush1.msra.mxu0 0.0
        %332 = vmatprep.subr.mxu0 0.0
        %333 = vmatpush1.msra.mxu0 0.0
        %334 = vmatprep.subr.mxu0 0.0
        %335 = vmatpush1.msra.mxu0 0.0
        %336 = vmatprep.subr.mxu0 0.0
        %337 = vmatpush1.msra.mxu0 0.0
        %338 = vmatprep.subr.mxu0 0.0
        %339 = vmatpush1.msra.mxu0 0.0
        %340 = vmatprep.subr.mxu0 0.0
        %341 = vmatpush1.msra.mxu0 0.0
        %342 = vmatprep.subr.mxu0 0.0
        %343 = vmatpush1.msra.mxu0 0.0
        %344 = vmatprep.subr.mxu0 0.0
        %345 = vmatpush1.msra.mxu0 0.0
        %346 = vmatprep.subr.mxu0 0.0
        %347 = vmatpush1.msra.mxu0 0.0
        %348 = vmatprep.subr.mxu0 0.0
        %349 = vmatpush1.msra.mxu0 0.0
        %350 = vmatprep.subr.mxu0 0.0
        %351 = vmatpush1.msra.mxu0 0.0
        %352 = vmatprep.subr.mxu0 0.0
        %353 = vmatpush1.msra.mxu0 0.0
        %354 = vmatprep.subr.mxu0 0.0
        %355 = vmatpush1.msra.mxu0 0.0
        %356 = vmatprep.subr.mxu0 0.0
        %357 = vmatpush1.msra.mxu0 0.0
        %358 = vmatprep.subr.mxu0 0.0
        %359 = vmatpush1.msra.mxu0 0.0
        %360 = vmatprep.subr.mxu0 0.0
        %361 = vmatpush1.msra.mxu0 0.0
        %362 = vmatprep.subr.mxu0 0.0
        %363 = vmatpush1.msra.mxu0 0.0
        %364 = vmatprep.subr.mxu0 0.0
        %365 = vmatpush1.msra.mxu0 0.0
        %366 = vmatprep.subr.mxu0 0.0
        %367 = vmatpush1.msra.mxu0 0.0
        %368 = vmatprep.subr.mxu0 0.0
        %369 = vmatpush1.msra.mxu0 0.0
        %370 = vmatprep.subr.mxu0 0.0
        %371 = vmatpush1.msra.mxu0 0.0
        %372 = vmatprep.subr.mxu0 0.0
        %373 = vmatpush1.msra.mxu0 0.0
        %374 = vmatprep.subr.mxu0 0.0
        %375 = vmatpush1.msra.mxu0 0.0
        %376 = vmatprep.subr.mxu0 0.0
        %377 = vmatpush1.msra.mxu0 0.0
        %378 = vmatprep.subr.mxu0 0.0
        %379 = vmatpush1.msra.mxu0 0.0
        %380 = vmatprep.mubr.f32.mxu0 0.0
        %381 = vmatmul.mubr.f32.gmra.mrb[0].mxu0 %v305
        %v382 = vpop.f32.mrb[0].mxu0
        %v383 = vadd.f32 %v286, %v382
        %v384 = vpop.f32.mrb[0].mxu0
        %v385 = vadd.f32 %v286, %v384
        %386 = vmatprep.mubr.f32.mxu0 0.0
        %387 = vmatmul.mubr.f32.gmra.mrb[0].mxu0 %v308
        %v388 = vpop.f32.mrb[0].mxu0
        %v389 = vadd.f32 %v291, %v388
        %v390 = vpop.f32.mrb[0].mxu0
        %v391 = vadd.f32 %v291, %v390
        %392 = vmatprep.mubr.f32.mxu0 0.0
        %393 = vmatmul.mubr.f32.gmra.mrb[0].mxu0 %v311
        %v394 = vpop.f32.mrb[0].mxu0
        %v395 = vadd.f32 %v296, %v394
        %v396 = vpop.f32.mrb[0].mxu0
        %v397 = vadd.f32 %v296, %v396
        %398 = vmatprep.mubr.f32.mxu0 0.0
        %399 = vmatmul.mubr.f32.gmra.mrb[0].mxu0 %v314
        %v400 = vpop.f32.mrb[0].mxu0
        %v401 = vadd.f32 %v301, %v400
        %v402 = vpop.f32.mrb[0].mxu0
        %v403 = vadd.f32 %v301, %v402
        %404 = vdwg.mxu0
        %v405 = vtanh.pop %v383
        %v406 = vtanh.pop %v385
        %v407 = vtanh.pop %v389
        %v408 = vtanh.pop %v391
        %v409 = vtanh.pop %v395
        %v410 = vtanh.pop %v397
        %v411 = vtanh.pop %v401
        %v412 = vtanh.pop %v403
        %v413 = vadd.f32 %v405, %v247
        %v414 = vadd.f32 %v406, %v248
        %v415 = vadd.f32 %v407, %v249
        %v416 = vadd.f32 %v408, %v250
        %v417 = vadd.f32 %v409, %v251
        %v418 = vadd.f32 %v410, %v252
        %v419 = vadd.f32 %v411, %v253
        %v420 = vadd.f32 %v412, %v254
        %s421 = scalar_lea.vmem %s1, 32
        %v422 = vld [vmem:[%s421] sm:$0xff]
        %v423 = vld [vmem:[%s421 + $0x8] sm:$0xff]
        %v424 = vld [vmem:[%s421 + $0x10] sm:$0xff]
        %v425 = vld [vmem:[%s421 + $0x18] sm:$0xff]
        %s426 = scalar_lea.vmem %s2, 32
        %v427 = vld [vmem:[%s426] sm:$0xff]
        %v428 = vld [vmem:[%s426 + $0x8] sm:$0xff]
        %v429 = vld [vmem:[%s426 + $0x10] sm:$0xff]
        %v430 = vld [vmem:[%s426 + $0x18] sm:$0xff]
        %432 = vset.pattern.permute.xlu0 0
        %433 = vperm.xlu0 %432, %v427
        %v434 = vpop.permute.xlu0 %433
        %437 = vset.pattern.permute.xlu0 0
        %438 = vperm.xlu0 %437, %v428
        %v439 = vpop.permute.xlu0 %438
        %442 = vset.pattern.permute.xlu0 0
        %443 = vperm.xlu0 %442, %v429
        %v444 = vpop.permute.xlu0 %443
        %447 = vset.pattern.permute.xlu0 0
        %448 = vperm.xlu0 %447, %v430
        %v449 = vpop.permute.xlu0 %448
        %v452 = vsel %vm303, %v422, 0
        %v455 = vsel %vm303, %v423, 0
        %v458 = vsel %vm303, %v424, 0
        %v461 = vsel %vm303, %v425, 0
        %463 = vmatprep.subr.mxu0 %v414
        %464 = vmatpush1.msra.mxu0 %v413
        %465 = vmatprep.subr.mxu0 %v416
        %466 = vmatpush1.msra.mxu0 %v415
        %467 = vmatprep.subr.mxu0 %v418
        %468 = vmatpush1.msra.mxu0 %v417
        %469 = vmatprep.subr.mxu0 %v420
        %470 = vmatpush1.msra.mxu0 %v419
        %471 = vmatprep.subr.mxu0 0.0
        %472 = vmatpush1.msra.mxu0 0.0
        %473 = vmatprep.subr.mxu0 0.0
        %474 = vmatpush1.msra.mxu0 0.0
        %475 = vmatprep.subr.mxu0 0.0
        %476 = vmatpush1.msra.mxu0 0.0
        %477 = vmatprep.subr.mxu0 0.0
        %478 = vmatpush1.msra.mxu0 0.0
        %479 = vmatprep.subr.mxu0 0.0
        %480 = vmatpush1.msra.mxu0 0.0
        %481 = vmatprep.subr.mxu0 0.0
        %482 = vmatpush1.msra.mxu0 0.0
        %483 = vmatprep.subr.mxu0 0.0
        %484 = vmatpush1.msra.mxu0 0.0
        %485 = vmatprep.subr.mxu0 0.0
        %486 = vmatpush1.msra.mxu0 0.0
        %487 = vmatprep.subr.mxu0 0.0
        %488 = vmatpush1.msra.mxu0 0.0
        %489 = vmatprep.subr.mxu0 0.0
        %490 = vmatpush1.msra.mxu0 0.0
        %491 = vmatprep.subr.mxu0 0.0
        %492 = vmatpush1.msra.mxu0 0.0
        %493 = vmatprep.subr.mxu0 0.0
        %494 = vmatpush1.msra.mxu0 0.0
        %495 = vmatprep.subr.mxu0 0.0
        %496 = vmatpush1.msra.mxu0 0.0
        %497 = vmatprep.subr.mxu0 0.0
        %498 = vmatpush1.msra.mxu0 0.0
        %499 = vmatprep.subr.mxu0 0.0
        %500 = vmatpush1.msra.mxu0 0.0
        %501 = vmatprep.subr.mxu0 0.0
        %502 = vmatpush1.msra.mxu0 0.0
        %503 = vmatprep.subr.mxu0 0.0
        %504 = vmatpush1.msra.mxu0 0.0
        %505 = vmatprep.subr.mxu0 0.0
        %506 = vmatpush1.msra.mxu0 0.0
        %507 = vmatprep.subr.mxu0 0.0
        %508 = vmatpush1.msra.mxu0 0.0
        %509 = vmatprep.subr.mxu0 0.0
        %510 = vmatpush1.msra.mxu0 0.0
        %511 = vmatprep.subr.mxu0 0.0
        %512 = vmatpush1.msra.mxu0 0.0
        %513 = vmatprep.subr.mxu0 0.0
        %514 = vmatpush1.msra.mxu0 0.0
        %515 = vmatprep.subr.mxu0 0.0
        %516 = vmatpush1.msra.mxu0 0.0
        %517 = vmatprep.subr.mxu0 0.0
        %518 = vmatpush1.msra.mxu0 0.0
        %519 = vmatprep.subr.mxu0 0.0
        %520 = vmatpush1.msra.mxu0 0.0
        %521 = vmatprep.subr.mxu0 0.0
        %522 = vmatpush1.msra.mxu0 0.0
        %523 = vmatprep.subr.mxu0 0.0
        %524 = vmatpush1.msra.mxu0 0.0
        %525 = vmatprep.subr.mxu0 0.0
        %526 = vmatpush1.msra.mxu0 0.0
        %527 = vmatprep.mubr.f32.mxu0 0.0
        %528 = vmatmul.mubr.f32.gmra.mrb[0].mxu0 %v452
        %v529 = vpop.f32.mrb[0].mxu0
        %v530 = vadd.f32 %v434, %v529
        %v531 = vpop.f32.mrb[0].mxu0
        %v532 = vadd.f32 %v434, %v531
        %533 = vmatprep.mubr.f32.mxu0 0.0
        %534 = vmatmul.mubr.f32.gmra.mrb[0].mxu0 %v455
        %v535 = vpop.f32.mrb[0].mxu0
        %v536 = vadd.f32 %v439, %v535
        %v537 = vpop.f32.mrb[0].mxu0
        %v538 = vadd.f32 %v439, %v537
        %539 = vmatprep.mubr.f32.mxu0 0.0
        %540 = vmatmul.mubr.f32.gmra.mrb[0].mxu0 %v458
        %v541 = vpop.f32.mrb[0].mxu0
        %v542 = vadd.f32 %v444, %v541
        %v543 = vpop.f32.mrb[0].mxu0
        %v544 = vadd.f32 %v444, %v543
        %545 = vmatprep.mubr.f32.mxu0 0.0
        %546 = vmatmul.mubr.f32.gmra.mrb[0].mxu0 %v461
        %v547 = vpop.f32.mrb[0].mxu0
        %v548 = vadd.f32 %v449, %v547
        %v549 = vpop.f32.mrb[0].mxu0
        %v550 = vadd.f32 %v449, %v549
        %551 = vdwg.mxu0
        %v552 = vtanh.pop %v530
        %v553 = vtanh.pop %v532
        %v554 = vtanh.pop %v536
        %v555 = vtanh.pop %v538
        %v556 = vtanh.pop %v542
        %v557 = vtanh.pop %v544
        %v558 = vtanh.pop %v548
        %v559 = vtanh.pop %v550
        %v560 = vadd.f32 %v552, %v413
        %v561 = vadd.f32 %v553, %v414
        %v562 = vadd.f32 %v554, %v415
        %v563 = vadd.f32 %v555, %v416
        %v564 = vadd.f32 %v556, %v417
        %v565 = vadd.f32 %v557, %v418
        %v566 = vadd.f32 %v558, %v419
        %v567 = vadd.f32 %v559, %v420
        %s568 = scalar_lea.vmem %s1, 64
        %v569 = vld [vmem:[%s568] sm:$0xff]
        %v570 = vld [vmem:[%s568 + $0x8] sm:$0xff]
        %v571 = vld [vmem:[%s568 + $0x10] sm:$0xff]
        %v572 = vld [vmem:[%s568 + $0x18] sm:$0xff]
        %s573 = scalar_lea.vmem %s2, 64
        %v574 = vld [vmem:[%s573] sm:$0xff]
        %v575 = vld [vmem:[%s573 + $0x8] sm:$0xff]
        %v576 = vld [vmem:[%s573 + $0x10] sm:$0xff]
        %v577 = vld [vmem:[%s573 + $0x18] sm:$0xff]
        %579 = vset.pattern.permute.xlu0 0
        %580 = vperm.xlu0 %579, %v574
        %v581 = vpop.permute.xlu0 %580
        %584 = vset.pattern.permute.xlu0 0
        %585 = vperm.xlu0 %584, %v575
        %v586 = vpop.permute.xlu0 %585
        %589 = vset.pattern.permute.xlu0 0
        %590 = vperm.xlu0 %589, %v576
        %v591 = vpop.permute.xlu0 %590
        %594 = vset.pattern.permute.xlu0 0
        %595 = vperm.xlu0 %594, %v577
        %v596 = vpop.permute.xlu0 %595
        %v599 = vsel %vm303, %v569, 0
        %v602 = vsel %vm303, %v570, 0
        %v605 = vsel %vm303, %v571, 0
        %v608 = vsel %vm303, %v572, 0
        %610 = vmatprep.subr.mxu0 %v561
        %611 = vmatpush1.msra.mxu0 %v560
        %612 = vmatprep.subr.mxu0 %v563
        %613 = vmatpush1.msra.mxu0 %v562
        %614 = vmatprep.subr.mxu0 %v565
        %615 = vmatpush1.msra.mxu0 %v564
        %616 = vmatprep.subr.mxu0 %v567
        %617 = vmatpush1.msra.mxu0 %v566
        %618 = vmatprep.subr.mxu0 0.0
        %619 = vmatpush1.msra.mxu0 0.0
        %620 = vmatprep.subr.mxu0 0.0
        %621 = vmatpush1.msra.mxu0 0.0
        %622 = vmatprep.subr.mxu0 0.0
        %623 = vmatpush1.msra.mxu0 0.0
        %624 = vmatprep.subr.mxu0 0.0
        %625 = vmatpush1.msra.mxu0 0.0
        %626 = vmatprep.subr.mxu0 0.0
        %627 = vmatpush1.msra.mxu0 0.0
        %628 = vmatprep.subr.mxu0 0.0
        %629 = vmatpush1.msra.mxu0 0.0
        %630 = vmatprep.subr.mxu0 0.0
        %631 = vmatpush1.msra.mxu0 0.0
        %632 = vmatprep.subr.mxu0 0.0
        %633 = vmatpush1.msra.mxu0 0.0
        %634 = vmatprep.subr.mxu0 0.0
        %635 = vmatpush1.msra.mxu0 0.0
        %636 = vmatprep.subr.mxu0 0.0
        %637 = vmatpush1.msra.mxu0 0.0
        %638 = vmatprep.subr.mxu0 0.0
        %639 = vmatpush1.msra.mxu0 0.0
        %640 = vmatprep.subr.mxu0 0.0
        %641 = vmatpush1.msra.mxu0 0.0
        %642 = vmatprep.subr.mxu0 0.0
        %643 = vmatpush1.msra.mxu0 0.0
        %644 = vmatprep.subr.mxu0 0.0
        %645 = vmatpush1.msra.mxu0 0.0
        %646 = vmatprep.subr.mxu0 0.0
        %647 = vmatpush1.msra.mxu0 0.0
        %648 = vmatprep.subr.mxu0 0.0
        %649 = vmatpush1.msra.mxu0 0.0
        %650 = vmatprep.subr.mxu0 0.0
        %651 = vmatpush1.msra.mxu0 0.0
        %652 = vmatprep.subr.mxu0 0.0
        %653 = vmatpush1.msra.mxu0 0.0
        %654 = vmatprep.subr.mxu0 0.0
        %655 = vmatpush1.msra.mxu0 0.0
        %656 = vmatprep.subr.mxu0 0.0
        %657 = vmatpush1.msra.mxu0 0.0
        %658 = vmatprep.subr.mxu0 0.0
        %659 = vmatpush1.msra.mxu0 0.0
        %660 = vmatprep.subr.mxu0 0.0
        %661 = vmatpush1.msra.mxu0 0.0
        %662 = vmatprep.subr.mxu0 0.0
        %663 = vmatpush1.msra.mxu0 0.0
        %664 = vmatprep.subr.mxu0 0.0
        %665 = vmatpush1.msra.mxu0 0.0
        %666 = vmatprep.subr.mxu0 0.0
        %667 = vmatpush1.msra.mxu0 0.0
        %668 = vmatprep.subr.mxu0 0.0
        %669 = vmatpush1.msra.mxu0 0.0
        %670 = vmatprep.subr.mxu0 0.0
        %671 = vmatpush1.msra.mxu0 0.0
        %672 = vmatprep.subr.mxu0 0.0
        %673 = vmatpush1.msra.mxu0 0.0
        %674 = vmatprep.mubr.f32.mxu0 0.0
        %675 = vmatmul.mubr.f32.gmra.mrb[0].mxu0 %v599
        %v676 = vpop.f32.mrb[0].mxu0
        %v677 = vadd.f32 %v581, %v676
        %v678 = vpop.f32.mrb[0].mxu0
        %v679 = vadd.f32 %v581, %v678
        %680 = vmatprep.mubr.f32.mxu0 0.0
        %681 = vmatmul.mubr.f32.gmra.mrb[0].mxu0 %v602
        %v682 = vpop.f32.mrb[0].mxu0
        %v683 = vadd.f32 %v586, %v682
        %v684 = vpop.f32.mrb[0].mxu0
        %v685 = vadd.f32 %v586, %v684
        %686 = vmatprep.mubr.f32.mxu0 0.0
        %687 = vmatmul.mubr.f32.gmra.mrb[0].mxu0 %v605
        %v688 = vpop.f32.mrb[0].mxu0
        %v689 = vadd.f32 %v591, %v688
        %v690 = vpop.f32.mrb[0].mxu0
        %v691 = vadd.f32 %v591, %v690
        %692 = vmatprep.mubr.f32.mxu0 0.0
        %693 = vmatmul.mubr.f32.gmra.mrb[0].mxu0 %v608
        %v694 = vpop.f32.mrb[0].mxu0
        %v695 = vadd.f32 %v596, %v694
        %v696 = vpop.f32.mrb[0].mxu0
        %v697 = vadd.f32 %v596, %v696
        %698 = vdwg.mxu0
        %v699 = vtanh.pop %v677
        %v700 = vtanh.pop %v679
        %v701 = vtanh.pop %v683
        %v702 = vtanh.pop %v685
        %v703 = vtanh.pop %v689
        %v704 = vtanh.pop %v691
        %v705 = vtanh.pop %v695
        %v706 = vtanh.pop %v697
        %v707 = vadd.f32 %v699, %v560
        %v708 = vadd.f32 %v700, %v561
        %v709 = vadd.f32 %v701, %v562
        %v710 = vadd.f32 %v702, %v563
        %v711 = vadd.f32 %v703, %v564
        %v712 = vadd.f32 %v704, %v565
        %v713 = vadd.f32 %v705, %v566
        %v714 = vadd.f32 %v706, %v567
        %s715 = scalar_lea.vmem %s1, 96
        %v716 = vld [vmem:[%s715] sm:$0xff]
        %v717 = vld [vmem:[%s715 + $0x8] sm:$0xff]
        %v718 = vld [vmem:[%s715 + $0x10] sm:$0xff]
        %v719 = vld [vmem:[%s715 + $0x18] sm:$0xff]
        %s720 = scalar_lea.vmem %s2, 96
        %v721 = vld [vmem:[%s720] sm:$0xff]
        %v722 = vld [vmem:[%s720 + $0x8] sm:$0xff]
        %v723 = vld [vmem:[%s720 + $0x10] sm:$0xff]
        %v724 = vld [vmem:[%s720 + $0x18] sm:$0xff]
        %726 = vset.pattern.permute.xlu0 0
        %727 = vperm.xlu0 %726, %v721
        %v728 = vpop.permute.xlu0 %727
        %731 = vset.pattern.permute.xlu0 0
        %732 = vperm.xlu0 %731, %v722
        %v733 = vpop.permute.xlu0 %732
        %736 = vset.pattern.permute.xlu0 0
        %737 = vperm.xlu0 %736, %v723
        %v738 = vpop.permute.xlu0 %737
        %741 = vset.pattern.permute.xlu0 0
        %742 = vperm.xlu0 %741, %v724
        %v743 = vpop.permute.xlu0 %742
        %v746 = vsel %vm303, %v716, 0
        %v749 = vsel %vm303, %v717, 0
        %v752 = vsel %vm303, %v718, 0
        %v755 = vsel %vm303, %v719, 0
        %757 = vmatprep.subr.mxu0 %v708
        %758 = vmatpush1.msra.mxu0 %v707
        %759 = vmatprep.subr.mxu0 %v710
        %760 = vmatpush1.msra.mxu0 %v709
        %761 = vmatprep.subr.mxu0 %v712
        %762 = vmatpush1.msra.mxu0 %v711
        %763 = vmatprep.subr.mxu0 %v714
        %764 = vmatpush1.msra.mxu0 %v713
        %765 = vmatprep.subr.mxu0 0.0
        %766 = vmatpush1.msra.mxu0 0.0
        %767 = vmatprep.subr.mxu0 0.0
        %768 = vmatpush1.msra.mxu0 0.0
        %769 = vmatprep.subr.mxu0 0.0
        %770 = vmatpush1.msra.mxu0 0.0
        %771 = vmatprep.subr.mxu0 0.0
        %772 = vmatpush1.msra.mxu0 0.0
        %773 = vmatprep.subr.mxu0 0.0
        %774 = vmatpush1.msra.mxu0 0.0
        %775 = vmatprep.subr.mxu0 0.0
        %776 = vmatpush1.msra.mxu0 0.0
        %777 = vmatprep.subr.mxu0 0.0
        %778 = vmatpush1.msra.mxu0 0.0
        %779 = vmatprep.subr.mxu0 0.0
        %780 = vmatpush1.msra.mxu0 0.0
        %781 = vmatprep.subr.mxu0 0.0
        %782 = vmatpush1.msra.mxu0 0.0
        %783 = vmatprep.subr.mxu0 0.0
        %784 = vmatpush1.msra.mxu0 0.0
        %785 = vmatprep.subr.mxu0 0.0
        %786 = vmatpush1.msra.mxu0 0.0
        %787 = vmatprep.subr.mxu0 0.0
        %788 = vmatpush1.msra.mxu0 0.0
        %789 = vmatprep.subr.mxu0 0.0
        %790 = vmatpush1.msra.mxu0 0.0
        %791 = vmatprep.subr.mxu0 0.0
        %792 = vmatpush1.msra.mxu0 0.0
        %793 = vmatprep.subr.mxu0 0.0
        %794 = vmatpush1.msra.mxu0 0.0
        %795 = vmatprep.subr.mxu0 0.0
        %796 = vmatpush1.msra.mxu0 0.0
        %797 = vmatprep.subr.mxu0 0.0
        %798 = vmatpush1.msra.mxu0 0.0
        %799 = vmatprep.subr.mxu0 0.0
        %800 = vmatpush1.msra.mxu0 0.0
        %801 = vmatprep.subr.mxu0 0.0
        %802 = vmatpush1.msra.mxu0 0.0
        %803 = vmatprep.subr.mxu0 0.0
        %804 = vmatpush1.msra.mxu0 0.0
        %805 = vmatprep.subr.mxu0 0.0
        %806 = vmatpush1.msra.mxu0 0.0
        %807 = vmatprep.subr.mxu0 0.0
        %808 = vmatpush1.msra.mxu0 0.0
        %809 = vmatprep.subr.mxu0 0.0
        %810 = vmatpush1.msra.mxu0 0.0
        %811 = vmatprep.subr.mxu0 0.0
        %812 = vmatpush1.msra.mxu0 0.0
        %813 = vmatprep.subr.mxu0 0.0
        %814 = vmatpush1.msra.mxu0 0.0
        %815 = vmatprep.subr.mxu0 0.0
        %816 = vmatpush1.msra.mxu0 0.0
        %817 = vmatprep.subr.mxu0 0.0
        %818 = vmatpush1.msra.mxu0 0.0
        %819 = vmatprep.subr.mxu0 0.0
        %820 = vmatpush1.msra.mxu0 0.0
        %821 = vmatprep.mubr.f32.mxu0 0.0
        %822 = vmatmul.mubr.f32.gmra.mrb[0].mxu0 %v746
        %v823 = vpop.f32.mrb[0].mxu0
        %v824 = vadd.f32 %v728, %v823
        %v825 = vpop.f32.mrb[0].mxu0
        %v826 = vadd.f32 %v728, %v825
        %827 = vmatprep.mubr.f32.mxu0 0.0
        %828 = vmatmul.mubr.f32.gmra.mrb[0].mxu0 %v749
        %v829 = vpop.f32.mrb[0].mxu0
        %v830 = vadd.f32 %v733, %v829
        %v831 = vpop.f32.mrb[0].mxu0
        %v832 = vadd.f32 %v733, %v831
        %833 = vmatprep.mubr.f32.mxu0 0.0
        %834 = vmatmul.mubr.f32.gmra.mrb[0].mxu0 %v752
        %v835 = vpop.f32.mrb[0].mxu0
        %v836 = vadd.f32 %v738, %v835
        %v837 = vpop.f32.mrb[0].mxu0
        %v838 = vadd.f32 %v738, %v837
        %839 = vmatprep.mubr.f32.mxu0 0.0
        %840 = vmatmul.mubr.f32.gmra.mrb[0].mxu0 %v755
        %v841 = vpop.f32.mrb[0].mxu0
        %v842 = vadd.f32 %v743, %v841
        %v843 = vpop.f32.mrb[0].mxu0
        %v844 = vadd.f32 %v743, %v843
        %845 = vdwg.mxu0
        %v846 = vtanh.pop %v824
        %v847 = vtanh.pop %v826
        %v848 = vtanh.pop %v830
        %v849 = vtanh.pop %v832
        %v850 = vtanh.pop %v836
        %v851 = vtanh.pop %v838
        %v852 = vtanh.pop %v842
        %v853 = vtanh.pop %v844
        %v854 = vadd.f32 %v846, %v707
        %v855 = vadd.f32 %v847, %v708
        %v856 = vadd.f32 %v848, %v709
        %v857 = vadd.f32 %v849, %v710
        %v858 = vadd.f32 %v850, %v711
        %v859 = vadd.f32 %v851, %v712
        %v860 = vadd.f32 %v852, %v713
        %v861 = vadd.f32 %v853, %v714
        %v862 = vld [vmem:[%s3] sm:$0xff]
        %v863 = vld [vmem:[%s3 + $0x8] sm:$0xff]
        %v864 = vld [vmem:[%s3 + $0x10] sm:$0xff]
        %v865 = vld [vmem:[%s3 + $0x18] sm:$0xff]
        %867 = vset.pattern.permute.xlu0 0
        %868 = vperm.xlu0 %867, %v862
        %v869 = vpop.permute.xlu0 %868
        %872 = vset.pattern.permute.xlu0 0
        %873 = vperm.xlu0 %872, %v863
        %v874 = vpop.permute.xlu0 %873
        %877 = vset.pattern.permute.xlu0 0
        %878 = vperm.xlu0 %877, %v864
        %v879 = vpop.permute.xlu0 %878
        %882 = vset.pattern.permute.xlu0 0
        %883 = vperm.xlu0 %882, %v865
        %v884 = vpop.permute.xlu0 %883
        %v886 = vmul.f32 %v854, %v869
        %v887 = vmul.f32 %v855, %v869
        %v888 = vmul.f32 %v856, %v874
        %v889 = vmul.f32 %v857, %v874
        %v890 = vmul.f32 %v858, %v879
        %v891 = vmul.f32 %v859, %v879
        %v892 = vmul.f32 %v860, %v884
        %v893 = vmul.f32 %v861, %v884
        %v894 = vadd.f32 %v886, %v888
        %v895 = vadd.f32 %v894, %v890
        %v896 = vadd.f32 %v895, %v892
        %v897 = vrot.slane %v896, 4
        %v898 = vadd.f32 %v896, %v897
        %v899 = vrot.slane %v898, 2
        %v900 = vadd.f32 %v898, %v899
        %v901 = vrot.slane %v900, 1
        %v902 = vadd.f32 %v900, %v901
        %v903 = vadd.f32 %v887, %v889
        %v904 = vadd.f32 %v903, %v891
        %v905 = vadd.f32 %v904, %v893
        %v906 = vrot.slane %v905, 4
        %v907 = vadd.f32 %v905, %v906
        %v908 = vrot.slane %v907, 2
        %v909 = vadd.f32 %v907, %v908
        %v910 = vrot.slane %v909, 1
        %v911 = vadd.f32 %v909, %v910
        %v912 = vld [vmem:[#allocation2] sm:$0x1]
        %914 = vset.pattern.permute.xlu0 0
        %915 = vperm.xlu0 %914, %v912
        %v916 = vpop.permute.xlu0 %915
        %v918 = vlaneseq
        %v919 = vshrl.u32 %v918, 7
        %v920 = vsub.s32 0, %v919
        %v921 = vrot.slane %v916, %v920
        %v922 = vadd.f32 %v902, %v921
        %v923 = vadd.f32 %v911, %v921
        %v924 = vmul.f32 %v273, %v922
        %v925 = vmul.f32 %v274, %v923
        %v926 = vsub.f32 %v924, 1.0
        %v927 = vsub.f32 %v925, 1.0
        %v930 = vcombine.low %v926, %v927
        %v932 = vunpack.c.l.s4 1966171168
        %v933 = vunpack.c.0.s8 %v932
        %v934 = vlaneseq
        %v935 = vshrl.u32 %v934, 7
        %v936 = vsub.s32 %v933, %v935
        %v937 = vrot.slane %v930, %v936
        %v939 = vunpack.c.l.s4 1966171168
        %v940 = vunpack.c.0.s8 %v939
        %v941 = vlaneseq
        %v942 = vshrl.u32 %v941, 7
        %v943 = vsub.s32 %v940, %v942
        %v944 = vrot.slane %v937, %v943
        %v946 = vlaneseq
        %vm947 = vcmp.ge.s32.totalorder %v946, 0
        %vm948 = vcmp.lt.s32.totalorder %v946, 256
        %vm949 = vmand %vm947, %vm948
        %950 = vst.msk [vmem:[%s244] sm:$0x3] %vm949, %v944
        %s951 = sand.u32 %s142, 1
        %s952 = scalar_lea.sflag [#allocation5], %s951
        %s953 = sand.u32 %s142, 1
        %s954 = smul.addr %s953, 2
        %s955 = scalar_lea.vmem [#allocation6], %s954
        // Predicated region
        $region45: #{tpu_custom_call.1} parent=39 // pred_check
          %p956 = pneg %p152
        $region46: #{tpu_custom_call.1} parent=39 // pred_check_branch
          %958 = sbr.rel (%p956) target = $region48
        $region47: #{tpu_custom_call.1} parent=39 // pred_region
          %s959 = smul.u32 2, %s24
          %s961 = ssub.s32 32, 32
          %962 = vsyncadd %s952, %s961
          %s963 = smul.addr %s959, 16
          %s964 = scalar_lea.hbm %s5, %s963
          %s966 = sshll.u32 %s955, 4
          %s967 = int_to_ptr.vmem [resolvable:$true] %s966
          %969 = dma.vmem_to_hbm [thread:$0]  %s967, 32, %s964, %s952
        $region48: #{tpu_custom_call.1} parent=39 // pred_fallthru
          _
      $region40: #{tpu_custom_call.1} parent=5 // pred_fallthru
        _
      %p970 = scmp.le.s32.totalorder 2, %s19
      // Predicated region
      $region49: #{tpu_custom_call.1} parent=5 // pred_check
        %p971 = pneg %p970
      $region50: #{tpu_custom_call.1} parent=5 // pred_check_branch
        %973 = sbr.rel (%p971) target = $region52
      $region51: #{tpu_custom_call.1} parent=5 // pred_region
        %s974 = ssub.s32 %s19, 2
        // Predicated region
        $region53: #{tpu_custom_call.1} parent=51 // pred_check
          %p975 = pneg %p158
        $region54: #{tpu_custom_call.1} parent=51 // pred_check_branch
          %977 = sbr.rel (%p975) target = $region56
        $region55: #{tpu_custom_call.1} parent=51 // pred_region
          %s978 = sand.u32 %s143, 1
          %s979 = scalar_lea.sflag [#allocation5], %s978
          %s980 = sand.u32 %s143, 1
          %s981 = smul.addr %s980, 2
          %s982 = scalar_lea.vmem [#allocation6], %s981
          %983 = dma.done %s979, 32
        $region56: #{tpu_custom_call.1} parent=51 // pred_fallthru
          _
      $region52: #{tpu_custom_call.1} parent=5 // pred_fallthru
        _
    $region6: #{tpu_custom_call.1} parent=1 // loop_footer
      %s23 = sadd.s32 1, %s19
    $region7: #{tpu_custom_call.1} parent=1 // loop_footer_branch
      %18 = sbr.rel target = $region3
    $region8: #{tpu_custom_call.1} parent=1 // loop_exit
      _
    %984 = vsyncpa [#allocation4], 1
    %s985 = scalar_lea.sflag [#allocation4], 1
    %986 = vsyncpa %s985, 1
    %987 = vsyncpa [#allocation5], 1
    %s988 = scalar_lea.sflag [#allocation5], 1
    %989 = vsyncpa %s988, 1

</llo_original>
